<compile_context>
chip_gen: v5e
topology: v5e:2x2
jax: 0.10.0
libtpu: 0.0.40
codegen_flags: <defaults>
</compile_context>

<pallas_src>
import functools
import math

import jax
import jax.numpy as jnp
from jax.experimental import pallas as pl
from jax.experimental.pallas import tpu as pltpu


def _round_up(x, m):
    return (x + m - 1) // m * m


def _pick_tile(p_img, batch, cin_p, cout, halo_pad, *, vmem_budget=24 << 20, cap=8192):
    """Largest pixel tile (multiple of halo_pad, hence of 128) that fits the VMEM budget."""
    def vmem_bytes(t):
        return 4 * (2 * cin_p * t            # current window block (double-buffered)
                    + 2 * cin_p * halo_pad    # halo block (double-buffered)
                    + 2 * cout * t            # output tile (double-buffered)
                    + cin_p * (t + halo_pad)) # stitch scratch (single-buffered)
    need = _round_up(p_img, halo_pad)
    tm = halo_pad
    while tm + halo_pad <= min(cap, need) and vmem_bytes(tm + halo_pad) <= vmem_budget:
        tm += halo_pad
    # Keep >= 2 total grid steps when batch == 1 so v7x's two TensorCores both get work.
    if batch == 1 and tm >= need and need >= 2 * halo_pad:
        tm = _round_up(need // 2, halo_pad)
    return tm


# ----------------------------------------------------------------------------
# Pallas kernel: stitch window (2 aligned stores) + k*k accumulated MXU dots
# ----------------------------------------------------------------------------
def _dconv_kernel(cur_ref, halo_ref, w_ref, b_ref, o_ref, xs_ref, *,
                  tap_offsets, cin_p, cout, tm):
    # cur_ref : (1, Cin_p, TM)         lane-aligned pixel block of one image
    # halo_ref: (1, Cin_p, HALO_PAD)   next HALO_PAD pixels (window overhang)
    # w_ref   : (Cout_p, k*k*Cin_p)    fused weights, constant index map (VMEM resident)
    # b_ref   : (Cout_p, 1)
    # o_ref   : (1, Cout, TM)          lane-dense output tile
    # xs_ref  : (Cin_p, TM+HALO_PAD)   stitched window scratch (2 unmasked stores)
    xs_ref[:, :tm] = cur_ref[0]
    xs_ref[:, tm:] = halo_ref[0]
    acc = jnp.zeros((w_ref.shape[0], tm), jnp.float32)
    for t, off in enumerate(tap_offsets):        # static unroll over the k*k taps
        acc = acc + jnp.dot(
            w_ref[:, t * cin_p:(t + 1) * cin_p],
            xs_ref[:, off:off + tm],
            preferred_element_type=jnp.float32,
        )
    acc = acc + b_ref[...]
    o_ref[0] = jnp.maximum(acc[:cout], 0.0).astype(o_ref.dtype)   # nn.ReLU


# ----------------------------------------------------------------------------
# DConv forward wrapper
# ----------------------------------------------------------------------------
def dconv_forward(x, w, b, *, padding):
    """ReLU(conv2d(x, w, b)) with symmetric 'padding'. x: (B, Cin, H, W) NCHW."""
    # TODO(synk): dilation>1 / groups>1 Conv2d options of DConv are not implemented
    # (the module defaults of 1 are what is used here).
    B, Cin, H, W = x.shape
    Cout, Cin_w, k, _ = w.shape
    assert Cin_w == Cin
    pad = padding
    Hp, Wp = H + 2 * pad, W + 2 * pad
    Hout, Wout = Hp - k + 1, Wp - k + 1

    P_img = Hp * Wp
    halo = (k - 1) * (Wp + 1)                 # max tap offset dy*Wp + dx
    halo_pad = _round_up(max(halo, 1), 128)   # lane-aligned halo block

    Cin_p = _round_up(Cin, 8)                 # full-sublane stores / aligned contraction
    Cout_p = _round_up(Cout, 8)

    TM = _pick_tile(P_img, B, Cin_p, Cout, halo_pad)
    ntiles = pl.cdiv(P_img, TM)
    L = ntiles * TM + halo_pad                # per-image padded flat pixel length
    R = TM // halo_pad                        # halo-block stride (TM in halo_pad units)

    # --- glue: one fused pad pass, no transposes, no gather ------------------
    xpad = jnp.pad(x.astype(jnp.float32),
                   ((0, 0), (0, Cin_p - Cin), (pad, pad), (pad, pad)))   # (B,Cin_p,Hp,Wp)
    xflat = jnp.pad(xpad.reshape(B, Cin_p, P_img),
                    ((0, 0), (0, 0), (0, L - P_img)))                    # (B,Cin_p,L)

    # fused weights: column order (dy, dx, cin); zero rows/cols for padded channels
    w_p = jnp.zeros((Cout_p, Cin_p, k, k), jnp.float32).at[:Cout, :Cin].set(
        w.astype(jnp.float32))
    w_fused = jnp.transpose(w_p, (0, 2, 3, 1)).reshape(Cout_p, k * k * Cin_p)
    b_col = jnp.zeros((Cout_p, 1), jnp.float32).at[:Cout, 0].set(b.astype(jnp.float32))

    tap_offsets = tuple(dy * Wp + dx for dy in range(k) for dx in range(k))

    kernel = functools.partial(_dconv_kernel, tap_offsets=tap_offsets,
                               cin_p=Cin_p, cout=Cout, tm=TM)
    out = pl.pallas_call(
        kernel,
        out_shape=jax.ShapeDtypeStruct((B, Cout, ntiles * TM), jnp.float32),
        grid=(B, ntiles),
        in_specs=[
            pl.BlockSpec((1, Cin_p, TM), lambda bb, i: (bb, 0, i)),                 # cur
            pl.BlockSpec((1, Cin_p, halo_pad), lambda bb, i: (bb, 0, (i + 1) * R)), # halo
            pl.BlockSpec((Cout_p, k * k * Cin_p), lambda bb, i: (0, 0)),            # weights
            pl.BlockSpec((Cout_p, 1), lambda bb, i: (0, 0)),                        # bias
        ],
        out_specs=pl.BlockSpec((1, Cout, TM), lambda bb, i: (bb, 0, i)),   # lane-dense
        scratch_shapes=[pltpu.VMEM((Cin_p, TM + halo_pad), jnp.float32)],
        compiler_params=pltpu.CompilerParams(
            dimension_semantics=("parallel", "parallel"),
            vmem_limit_bytes=48 * 1024 * 1024,
        ),
    )(xflat, xflat, w_fused, b_col)

    # un-flatten: keep only the valid window-start positions (y < Hout, x < Wout)
    y = out[:, :, :P_img].reshape(B, Cout, Hp, Wp)[:, :, :Hout, :Wout]
    return y                                                             # NCHW


# ----------------------------------------------------------------------------
# DConv parameter init (mirrors DConv.__init__)
# ----------------------------------------------------------------------------
def init_dconv_params(key, infm, outfm, k):
    assert infm == outfm
    kw, kb = jax.random.split(key)
    w = jax.random.normal(kw, (outfm, infm, k, k), jnp.float32) * 0.01
    diag = jnp.arange(infm)
    w = w.at[diag, diag, k // 2, k // 2].set(1.0)            # identity centre tap
    bound = 1.0 / math.sqrt(infm * k * k)                    # default Conv2d bias init
    b = jax.random.uniform(kb, (outfm,), jnp.float32, -bound, bound) / 10.0
    return w, b


# ----------------------------------------------------------------------------
# Pure-JAX reference (lax conv) used only as a correctness check
# ----------------------------------------------------------------------------
def _ref_forward(x, w, b, padding):
    y = jax.lax.conv_general_dilated(
        x, w, window_strides=(1, 1), padding=((padding, padding),) * 2,
        dimension_numbers=("NCHW", "OIHW", "NCHW"))
    y = y + b.reshape(1, -1, 1, 1)
    return jnp.maximum(y, 0.0)


if __name__ == "__main__":
    key = jax.random.PRNGKey(0)
    kx, kp = jax.random.split(key)

    # small shapes consistent with DConv(infm=4, outfm=4, k=3, padding=1)
    N, infm, H, W, k = 2, 4, 16, 16, 3
    padding = k // 2
    x = jax.random.normal(kx, (N, infm, H, W), jnp.float32)
    w, b = init_dconv_params(kp, infm, infm, k)

    fwd = jax.jit(functools.partial(dconv_forward, padding=padding))
    out = jax.block_until_ready(fwd(x, w, b))

    assert out.shape == (N, infm, H, W), out.shape
    ref = _ref_forward(x, w, b, padding)
    if not jnp.allclose(out, ref, atol=1e-4, rtol=1e-4):
        raise SystemExit("kernel/reference mismatch")

    print("KERNEL_OK")
</pallas_src>

<mosaic_0001>
module attributes {stable_mosaic.version = 11 : i64} {
  func.func @_dconv_kernel(%arg0: i32, %arg1: i32, %arg2: memref<1x8x384xf32, #tpu.memory_space<vmem>>, %arg3: memref<1x8x128xf32, #tpu.memory_space<vmem>>, %arg4: memref<8x72xf32, #tpu.memory_space<vmem>>, %arg5: memref<8x1xf32, #tpu.memory_space<vmem>>, %arg6: memref<1x4x384xf32, #tpu.memory_space<vmem>>, %arg7: memref<8x512xf32, #tpu.memory_space<vmem>>) attributes {dimension_semantics = [#tpu.dimension_semantics<parallel>, #tpu.dimension_semantics<parallel>], iteration_bounds = array<i64: 2, 1>, scalar_prefetch = 0 : i64, scratch_operands = 1 : i64, tpu.core_type = #tpu.core_type<tc>, window_params = [{transform_indices = @transform_0, window_bounds = array<i64: 1, 8, 384>}, {transform_indices = @transform_1, window_bounds = array<i64: 1, 8, 128>}, {pipeline_mode = #tpu.pipeline_mode<synchronous>, transform_indices = @transform_2, window_bounds = array<i64: 8, 72>}, {pipeline_mode = #tpu.pipeline_mode<synchronous>, transform_indices = @transform_3, window_bounds = array<i64: 8, 1>}, {transform_indices = @transform_4, window_bounds = array<i64: 1, 4, 384>}]} {
    %c0 = arith.constant 0 : index
    %c0_0 = arith.constant 0 : index
    %c0_1 = arith.constant 0 : index
    %0 = vector.load %arg2[%c0, %c0_0, %c0_1] : memref<1x8x384xf32, #tpu.memory_space<vmem>>, vector<1x8x384xf32>
    %1 = vector.shape_cast %0 : vector<1x8x384xf32> to vector<8x384xf32>
    %c0_2 = arith.constant 0 : index
    %c0_3 = arith.constant 0 : index
    %2 = vector.load %arg7[%c0_2, %c0_3] : memref<8x512xf32, #tpu.memory_space<vmem>>, vector<8x384xf32>
    tpu.vector_store %arg7[%c0_2, %c0_3], %1 {strides = array<i32>} : memref<8x512xf32, #tpu.memory_space<vmem>>, vector<8x384xf32>,
    %c0_4 = arith.constant 0 : index
    %c0_5 = arith.constant 0 : index
    %c0_6 = arith.constant 0 : index
    %3 = vector.load %arg3[%c0_4, %c0_5, %c0_6] : memref<1x8x128xf32, #tpu.memory_space<vmem>>, vector<1x8x128xf32>
    %4 = vector.shape_cast %3 : vector<1x8x128xf32> to vector<8x128xf32>
    %c0_7 = arith.constant 0 : index
    %c384 = arith.constant 384 : index
    %5 = vector.load %arg7[%c0_7, %c384] : memref<8x512xf32, #tpu.memory_space<vmem>>, vector<8x128xf32>
    tpu.vector_store %arg7[%c0_7, %c384], %4 {strides = array<i32>} : memref<8x512xf32, #tpu.memory_space<vmem>>, vector<8x128xf32>,
    %cst = arith.constant 0.000000e+00 : f32
    %6 = vector.broadcast %cst : f32 to vector<8x384xf32>
    %c0_8 = arith.constant 0 : index
    %c0_9 = arith.constant 0 : index
    %7 = vector.load %arg4[%c0_8, %c0_9] : memref<8x72xf32, #tpu.memory_space<vmem>>, vector<8x8xf32>
    %c0_10 = arith.constant 0 : index
    %c0_11 = arith.constant 0 : index
    %8 = vector.load %arg7[%c0_10, %c0_11] : memref<8x512xf32, #tpu.memory_space<vmem>>, vector<8x384xf32>
    %cst_12 = arith.constant dense<0.000000e+00> : vector<8x384xf32>
    %9 = tpu.matmul %7, %8, %cst_12 {dimension_numbers = #tpu.dot_dimension_numbers<[1], [0], [0], [1], [0, 0, 1, 1], [], []>} : vector<8x8xf32>, vector<8x384xf32>, vector<8x384xf32> -> vector<8x384xf32>
    %10 = arith.addf %6, %9 : vector<8x384xf32>
    %c0_13 = arith.constant 0 : index
    %c8 = arith.constant 8 : index
    %11 = vector.load %arg4[%c0_13, %c8] : memref<8x72xf32, #tpu.memory_space<vmem>>, vector<8x8xf32>
    %c0_14 = arith.constant 0 : index
    %c1 = arith.constant 1 : index
    %12 = vector.load %arg7[%c0_14, %c1] : memref<8x512xf32, #tpu.memory_space<vmem>>, vector<8x384xf32>
    %cst_15 = arith.constant dense<0.000000e+00> : vector<8x384xf32>
    %13 = tpu.matmul %11, %12, %cst_15 {dimension_numbers = #tpu.dot_dimension_numbers<[1], [0], [0], [1], [0, 0, 1, 1], [], []>} : vector<8x8xf32>, vector<8x384xf32>, vector<8x384xf32> -> vector<8x384xf32>
    %14 = arith.addf %10, %13 : vector<8x384xf32>
    %c0_16 = arith.constant 0 : index
    %c16 = arith.constant 16 : index
    %15 = vector.load %arg4[%c0_16, %c16] : memref<8x72xf32, #tpu.memory_space<vmem>>, vector<8x8xf32>
    %c0_17 = arith.constant 0 : index
    %c2 = arith.constant 2 : index
    %16 = vector.load %arg7[%c0_17, %c2] : memref<8x512xf32, #tpu.memory_space<vmem>>, vector<8x384xf32>
    %cst_18 = arith.constant dense<0.000000e+00> : vector<8x384xf32>
    %17 = tpu.matmul %15, %16, %cst_18 {dimension_numbers = #tpu.dot_dimension_numbers<[1], [0], [0], [1], [0, 0, 1, 1], [], []>} : vector<8x8xf32>, vector<8x384xf32>, vector<8x384xf32> -> vector<8x384xf32>
    %18 = arith.addf %14, %17 : vector<8x384xf32>
    %c0_19 = arith.constant 0 : index
    %c24 = arith.constant 24 : index
    %19 = vector.load %arg4[%c0_19, %c24] : memref<8x72xf32, #tpu.memory_space<vmem>>, vector<8x8xf32>
    %c0_20 = arith.constant 0 : index
    %c18 = arith.constant 18 : index
    %20 = vector.load %arg7[%c0_20, %c18] : memref<8x512xf32, #tpu.memory_space<vmem>>, vector<8x384xf32>
    %cst_21 = arith.constant dense<0.000000e+00> : vector<8x384xf32>
    %21 = tpu.matmul %19, %20, %cst_21 {dimension_numbers = #tpu.dot_dimension_numbers<[1], [0], [0], [1], [0, 0, 1, 1], [], []>} : vector<8x8xf32>, vector<8x384xf32>, vector<8x384xf32> -> vector<8x384xf32>
    %22 = arith.addf %18, %21 : vector<8x384xf32>
    %c0_22 = arith.constant 0 : index
    %c32 = arith.constant 32 : index
    %23 = vector.load %arg4[%c0_22, %c32] : memref<8x72xf32, #tpu.memory_space<vmem>>, vector<8x8xf32>
    %c0_23 = arith.constant 0 : index
    %c19 = arith.constant 19 : index
    %24 = vector.load %arg7[%c0_23, %c19] : memref<8x512xf32, #tpu.memory_space<vmem>>, vector<8x384xf32>
    %cst_24 = arith.constant dense<0.000000e+00> : vector<8x384xf32>
    %25 = tpu.matmul %23, %24, %cst_24 {dimension_numbers = #tpu.dot_dimension_numbers<[1], [0], [0], [1], [0, 0, 1, 1], [], []>} : vector<8x8xf32>, vector<8x384xf32>, vector<8x384xf32> -> vector<8x384xf32>
    %26 = arith.addf %22, %25 : vector<8x384xf32>
    %c0_25 = arith.constant 0 : index
    %c40 = arith.constant 40 : index
    %27 = vector.load %arg4[%c0_25, %c40] : memref<8x72xf32, #tpu.memory_space<vmem>>, vector<8x8xf32>
    %c0_26 = arith.constant 0 : index
    %c20 = arith.constant 20 : index
    %28 = vector.load %arg7[%c0_26, %c20] : memref<8x512xf32, #tpu.memory_space<vmem>>, vector<8x384xf32>
    %cst_27 = arith.constant dense<0.000000e+00> : vector<8x384xf32>
    %29 = tpu.matmul %27, %28, %cst_27 {dimension_numbers = #tpu.dot_dimension_numbers<[1], [0], [0], [1], [0, 0, 1, 1], [], []>} : vector<8x8xf32>, vector<8x384xf32>, vector<8x384xf32> -> vector<8x384xf32>
    %30 = arith.addf %26, %29 : vector<8x384xf32>
    %c0_28 = arith.constant 0 : index
    %c48 = arith.constant 48 : index
    %31 = vector.load %arg4[%c0_28, %c48] : memref<8x72xf32, #tpu.memory_space<vmem>>, vector<8x8xf32>
    %c0_29 = arith.constant 0 : index
    %c36 = arith.constant 36 : index
    %32 = vector.load %arg7[%c0_29, %c36] : memref<8x512xf32, #tpu.memory_space<vmem>>, vector<8x384xf32>
    %cst_30 = arith.constant dense<0.000000e+00> : vector<8x384xf32>
    %33 = tpu.matmul %31, %32, %cst_30 {dimension_numbers = #tpu.dot_dimension_numbers<[1], [0], [0], [1], [0, 0, 1, 1], [], []>} : vector<8x8xf32>, vector<8x384xf32>, vector<8x384xf32> -> vector<8x384xf32>
    %34 = arith.addf %30, %33 : vector<8x384xf32>
    %c0_31 = arith.constant 0 : index
    %c56 = arith.constant 56 : index
    %35 = vector.load %arg4[%c0_31, %c56] : memref<8x72xf32, #tpu.memory_space<vmem>>, vector<8x8xf32>
    %c0_32 = arith.constant 0 : index
    %c37 = arith.constant 37 : index
    %36 = vector.load %arg7[%c0_32, %c37] : memref<8x512xf32, #tpu.memory_space<vmem>>, vector<8x384xf32>
    %cst_33 = arith.constant dense<0.000000e+00> : vector<8x384xf32>
    %37 = tpu.matmul %35, %36, %cst_33 {dimension_numbers = #tpu.dot_dimension_numbers<[1], [0], [0], [1], [0, 0, 1, 1], [], []>} : vector<8x8xf32>, vector<8x384xf32>, vector<8x384xf32> -> vector<8x384xf32>
    %38 = arith.addf %34, %37 : vector<8x384xf32>
    %c0_34 = arith.constant 0 : index
    %c64 = arith.constant 64 : index
    %39 = vector.load %arg4[%c0_34, %c64] : memref<8x72xf32, #tpu.memory_space<vmem>>, vector<8x8xf32>
    %c0_35 = arith.constant 0 : index
    %c38 = arith.constant 38 : index
    %40 = vector.load %arg7[%c0_35, %c38] : memref<8x512xf32, #tpu.memory_space<vmem>>, vector<8x384xf32>
    %cst_36 = arith.constant dense<0.000000e+00> : vector<8x384xf32>
    %41 = tpu.matmul %39, %40, %cst_36 {dimension_numbers = #tpu.dot_dimension_numbers<[1], [0], [0], [1], [0, 0, 1, 1], [], []>} : vector<8x8xf32>, vector<8x384xf32>, vector<8x384xf32> -> vector<8x384xf32>
    %42 = arith.addf %38, %41 : vector<8x384xf32>
    %c0_37 = arith.constant 0 : index
    %c0_38 = arith.constant 0 : index
    %43 = vector.load %arg5[%c0_37, %c0_38] : memref<8x1xf32, #tpu.memory_space<vmem>>, vector<8x1xf32>
    %44 = vector.broadcast %43 : vector<8x1xf32> to vector<8x384xf32>
    %45 = arith.addf %42, %44 : vector<8x384xf32>
    %46 = vector.extract_strided_slice %45 {offsets = [0, 0], sizes = [4, 384], strides = [1, 1]} : vector<8x384xf32> to vector<4x384xf32>
    %cst_39 = arith.constant 0.000000e+00 : f32
    %47 = vector.broadcast %cst_39 : f32 to vector<4x384xf32>
    %48 = arith.maximumf %46, %47 : vector<4x384xf32>
    %c0_40 = arith.constant 0 : index
    %c0_41 = arith.constant 0 : index
    %c0_42 = arith.constant 0 : index
    %49 = vector.load %arg6[%c0_40, %c0_41, %c0_42] : memref<1x4x384xf32, #tpu.memory_space<vmem>>, vector<1x4x384xf32>
    %50 = vector.shape_cast %49 : vector<1x4x384xf32> to vector<4x384xf32>
    %51 = vector.shape_cast %48 : vector<4x384xf32> to vector<1x4x384xf32>
    tpu.vector_store %arg6[%c0_40, %c0_41, %c0_42], %51 {strides = array<i32>} : memref<1x4x384xf32, #tpu.memory_space<vmem>>, vector<1x4x384xf32>,
    return
  }
  func.func @transform_0(%arg0: i32, %arg1: i32) -> (i32, i32, i32) {
    %c0_i32 = arith.constant 0 : i32
    %c0_i32_0 = arith.constant 0 : i32
    return %arg0, %c0_i32, %arg1 : i32, i32, i32
  }
  func.func @transform_1(%arg0: i32, %arg1: i32) -> (i32, i32, i32) {
    %c1_i32 = arith.constant 1 : i32
    %0 = arith.addi %arg1, %c1_i32 : i32
    %c3_i32 = arith.constant 3 : i32
    %1 = arith.muli %0, %c3_i32 : i32
    %c0_i32 = arith.constant 0 : i32
    %c0_i32_0 = arith.constant 0 : i32
    return %arg0, %c0_i32, %1 : i32, i32, i32
  }
  func.func @transform_2(%arg0: i32, %arg1: i32) -> (i32, i32) {
    %c0_i32 = arith.constant 0 : i32
    %c0_i32_0 = arith.constant 0 : i32
    %c0_i32_1 = arith.constant 0 : i32
    return %c0_i32, %c0_i32_0 : i32, i32
  }
  func.func @transform_3(%arg0: i32, %arg1: i32) -> (i32, i32) {
    %c0_i32 = arith.constant 0 : i32
    %c0_i32_0 = arith.constant 0 : i32
    %c0_i32_1 = arith.constant 0 : i32
    return %c0_i32, %c0_i32_0 : i32, i32
  }
  func.func @transform_4(%arg0: i32, %arg1: i32) -> (i32, i32, i32) {
    %c0_i32 = arith.constant 0 : i32
    %c0_i32_0 = arith.constant 0 : i32
    return %arg0, %c0_i32, %arg1 : i32, i32, i32
  }
}

</mosaic_0001>

<llo_original>
// kernel: dconv_forward.1
$region0: #{dconv_forward.1}
  #allocation0 [shape = 'u32[]', space=smem, size = 0x4, offset = 0x4, fixed_abs, tag = 'smem constant byte address 0x4 - core index']
  #allocation1 [shape = 'u32[72,128]{1,0:T(1,128)}', space=vmem, size = 0x9000, scoped, tag = 'internal scratch']
  #allocation2 [shape = 'f32[8,512]{1,0:T(8,128)}', space=vmem, size = 0x4000, scoped, tag = 'scratch operand']
  %s0 = inlined_call_operand.vmem [shape: f32[2,8,512], index: 0, kind: input, shape index: {}, may-alias: {0,1}]
  %s1 = inlined_call_operand.vmem [shape: f32[2,8,512], index: 1, kind: input, shape index: {}, may-alias: {0,1}]
  %s2 = inlined_call_operand.vmem [shape: f32[8,72], index: 2, kind: input, shape index: {}]
  %s3 = inlined_call_operand.vmem [shape: f32[8,1], index: 3, kind: input, shape index: {}]
  %s4 = inlined_call_operand.vmem [shape: f32[2,4,384], index: 4, kind: output, shape index: {}]
  %s5 = sld [smem:[#allocation0]]
  $region49: #{dconv_forward.1} parent=0
    _
  %s7 = ssub.s32 1, %s5
  %s8 = scalar_select 0, %s7, %s5
  loop: start=0, step=1, limit=4
  $region2: #{dconv_forward.1} parent=0 // loop_pre_header
    _
  $region3: #{dconv_forward.1} parent=0 // loop_header
    %s10 = sphi 0, %s14
    %p11 = scmp.ge.s32.totalorder %s10, 4
    %s17 = sphi 0, %s29
    %s18 = sphi 0, %s25
    %s19 = sphi 0, %s17
    %s20 = sphi 0, %s18
    %s21 = sphi 0, %s19
    %s22 = sphi 0, %s20
    %s34 = sphi 0, %s36
    %s37 = sphi 0, %s34
    %s38 = sphi 0, %s37
    %s54 = sphi 0, %s38
    %s66 = sphi 0, %s68
    %s69 = sphi 0, %s66
    %s70 = sphi 0, %s69
    %s86 = sphi 0, %s70
    %s90 = sphi 0, %s90
    %s92 = sphi 0, %s90
    %s93 = sphi 0, %s92
    %s107 = sphi 0, %s93
    %s111 = sphi 0, %s111
    %s113 = sphi 0, %s111
    %s114 = sphi 0, %s113
    %s128 = sphi 0, %s114
    %s136 = sphi 0, %s138
    %s139 = sphi 0, %s136
    %s140 = sphi 0, %s139
    %s156 = sphi 0, %s140
  $region4: #{dconv_forward.1} parent=0 // loop_header_branch
    %13 = sbr.rel (%p11) target = $region8
  $region5: #{dconv_forward.1} parent=0 // loop_body
    %s15 = ssub.s32 %s10, 1
    %s16 = ssub.s32 %s10, 2
    %s23 = sadd.s32 1, %s18
    %p24 = scmp.ge.s32.totalorder %s23, 1
    %s25 = scalar_select %p24, 0, %s23
    %s26 = sadd.s32 1, %s17
    %s27 = scalar_select %p24, %s26, %s17
    %p28 = scmp.ge.s32.totalorder %s27, 2
    %s29 = scalar_select %p28, 0, %s27
    %s30 = ssub.s32 %s17, %s29
    %s31 = ssub.s32 %s18, %s25
    %s32 = sor.u32 %s30, %s31
    %p33 = scmp.eq.s32.totalorder %s32, 0
    %s35 = sadd.s32 %s34, 1
    %s36 = scalar_select %p33, %s34, %s35
    %p39 = pneg %p33
    %p40 = scmp.eq.s32.totalorder %s10, 1
    %p41 = por %p39, %p40
    %p42 = scmp.ne.s32.totalorder %s34, %s37
    %p43 = scmp.eq.s32.totalorder %s10, 0
    %p44 = por %p42, %p43
    %p45 = scmp.ne.s32.totalorder %s34, %s37
    %p46 = scmp.eq.s32.totalorder %s15, 1
    %p47 = por %p45, %p46
    %p48 = scmp.ne.s32.totalorder %s37, %s38
    %p49 = scmp.eq.s32.totalorder %s15, 0
    %p50 = por %p48, %p49
    %p51 = scmp.ne.s32.totalorder %s37, %s38
    %p52 = scmp.eq.s32.totalorder %s16, 1
    %p53 = por %p51, %p52
    %p55 = scmp.ne.s32.totalorder %s38, %s54
    %p56 = scmp.eq.s32.totalorder %s16, 0
    %p57 = por %p55, %p56
    %s58 = sadd.s32 %s18, 1
    %s59 = smul.u32 %s58, 3
    %s60 = sadd.s32 %s25, 1
    %s61 = smul.u32 %s60, 3
    %s62 = ssub.s32 %s17, %s29
    %s63 = ssub.s32 %s59, %s61
    %s64 = sor.u32 %s62, %s63
    %p65 = scmp.eq.s32.totalorder %s64, 0
    %s67 = sadd.s32 %s66, 1
    %s68 = scalar_select %p65, %s66, %s67
    %p71 = pneg %p65
    %p72 = scmp.eq.s32.totalorder %s10, 1
    %p73 = por %p71, %p72
    %p74 = scmp.ne.s32.totalorder %s66, %s69
    %p75 = scmp.eq.s32.totalorder %s10, 0
    %p76 = por %p74, %p75
    %p77 = scmp.ne.s32.totalorder %s66, %s69
    %p78 = scmp.eq.s32.totalorder %s15, 1
    %p79 = por %p77, %p78
    %p80 = scmp.ne.s32.totalorder %s69, %s70
    %p81 = scmp.eq.s32.totalorder %s15, 0
    %p82 = por %p80, %p81
    %p83 = scmp.ne.s32.totalorder %s69, %s70
    %p84 = scmp.eq.s32.totalorder %s16, 1
    %p85 = por %p83, %p84
    %p87 = scmp.ne.s32.totalorder %s70, %s86
    %p88 = scmp.eq.s32.totalorder %s16, 0
    %p89 = por %p87, %p88
    %s91 = sadd.s32 %s90, 1
    %p94 = scmp.eq.s32.totalorder %s10, 1
    %p95 = scmp.ne.s32.totalorder %s90, %s92
    %p96 = scmp.eq.s32.totalorder %s10, 0
    %p97 = por %p95, %p96
    %p98 = scmp.ne.s32.totalorder %s90, %s92
    %p99 = scmp.eq.s32.totalorder %s15, 1
    %p100 = por %p98, %p99
    %p101 = scmp.ne.s32.totalorder %s92, %s93
    %p102 = scmp.eq.s32.totalorder %s15, 0
    %p103 = por %p101, %p102
    %p104 = scmp.ne.s32.totalorder %s92, %s93
    %p105 = scmp.eq.s32.totalorder %s16, 1
    %p106 = por %p104, %p105
    %p108 = scmp.ne.s32.totalorder %s93, %s107
    %p109 = scmp.eq.s32.totalorder %s16, 0
    %p110 = por %p108, %p109
    %s112 = sadd.s32 %s111, 1
    %p115 = scmp.eq.s32.totalorder %s10, 1
    %p116 = scmp.ne.s32.totalorder %s111, %s113
    %p117 = scmp.eq.s32.totalorder %s10, 0
    %p118 = por %p116, %p117
    %p119 = scmp.ne.s32.totalorder %s111, %s113
    %p120 = scmp.eq.s32.totalorder %s15, 1
    %p121 = por %p119, %p120
    %p122 = scmp.ne.s32.totalorder %s113, %s114
    %p123 = scmp.eq.s32.totalorder %s15, 0
    %p124 = por %p122, %p123
    %p125 = scmp.ne.s32.totalorder %s113, %s114
    %p126 = scmp.eq.s32.totalorder %s16, 1
    %p127 = por %p125, %p126
    %p129 = scmp.ne.s32.totalorder %s114, %s128
    %p130 = scmp.eq.s32.totalorder %s16, 0
    %p131 = por %p129, %p130
    %s132 = ssub.s32 %s17, %s29
    %s133 = ssub.s32 %s18, %s25
    %s134 = sor.u32 %s132, %s133
    %p135 = scmp.eq.s32.totalorder %s134, 0
    %s137 = sadd.s32 %s136, 1
    %s138 = scalar_select %p135, %s136, %s137
    %p141 = pneg %p135
    %p142 = scmp.eq.s32.totalorder %s10, 1
    %p143 = por %p141, %p142
    %p144 = scmp.ne.s32.totalorder %s136, %s139
    %p145 = scmp.eq.s32.totalorder %s10, 0
    %p146 = por %p144, %p145
    %p147 = scmp.ne.s32.totalorder %s136, %s139
    %p148 = scmp.eq.s32.totalorder %s15, 1
    %p149 = por %p147, %p148
    %p150 = scmp.ne.s32.totalorder %s139, %s140
    %p151 = scmp.eq.s32.totalorder %s15, 0
    %p152 = por %p150, %p151
    %p153 = scmp.ne.s32.totalorder %s139, %s140
    %p154 = scmp.eq.s32.totalorder %s16, 1
    %p155 = por %p153, %p154
    %p157 = scmp.ne.s32.totalorder %s140, %s156
    %p158 = scmp.eq.s32.totalorder %s16, 0
    %p159 = por %p157, %p158
    %p160 = scmp.le.s32.totalorder 1, %s10
    %p161 = scmp.lt.s32.totalorder %s10, 3
    %p162 = pnand %p160, %p161
    %p163 = pneg %p162
    // Predicated region
    $region9: #{dconv_forward.1} parent=5 // pred_check
      _
    $region10: #{dconv_forward.1} parent=5 // pred_check_branch
      %165 = sbr.rel (%p162) target = $region12
    $region11: #{dconv_forward.1} parent=5 // pred_region
      %s166 = ssub.s32 %s10, 1
      // Predicated region
      $region13: #{dconv_forward.1} parent=11 // pred_check
        %p167 = pneg %p103
      $region14: #{dconv_forward.1} parent=11 // pred_check_branch
        %169 = sbr.rel (%p167) target = $region16
      $region15: #{dconv_forward.1} parent=11 // pred_region
        _
      $region16: #{dconv_forward.1} parent=11 // pred_fallthru
        _
      // Predicated region
      $region17: #{dconv_forward.1} parent=11 // pred_check
        %p170 = pneg %p124
      $region18: #{dconv_forward.1} parent=11 // pred_check_branch
        %172 = sbr.rel (%p170) target = $region20
      $region19: #{dconv_forward.1} parent=11 // pred_region
        _
      $region20: #{dconv_forward.1} parent=11 // pred_fallthru
        _
    $region12: #{dconv_forward.1} parent=5 // pred_fallthru
      _
    %p173 = scmp.lt.s32.totalorder %s10, 2
    // Predicated region
    $region21: #{dconv_forward.1} parent=5 // pred_check
      %p174 = pneg %p173
    $region22: #{dconv_forward.1} parent=5 // pred_check_branch
      %176 = sbr.rel (%p174) target = $region24
    $region23: #{dconv_forward.1} parent=5 // pred_region
      // Predicated region
      $region25: #{dconv_forward.1} parent=23 // pred_check
        %p177 = pneg %p44
      $region26: #{dconv_forward.1} parent=23 // pred_check_branch
        %179 = sbr.rel (%p177) target = $region28
      $region27: #{dconv_forward.1} parent=23 // pred_region
        %s180 = smul.u32 3, %s18
        %s181 = ssub.s32 4, %s180
        %p182 = scmp.lt.s32.totalorder %s181, 3
        %s183 = scalar_select %p182, %s181, 3
        %s184 = smul.u32 8, %s183
        %p185 = scmp.lt.s32.totalorder %s17, 1
        %s186 = scalar_select %p185, %s17, 1
        %p187 = scmp.lt.s32.totalorder %s180, 3
        %s188 = scalar_select %p187, %s180, 3
        %s189 = smul.addr %s186, 4
        %s190 = sadd.s32 %s188, %s189
        %s191 = smul.addr %s190, 8
        %s192 = scalar_lea.vmem %s0, %s191
        %s193 = smul.u32 3, %s18
        %s194 = ssub.s32 4, %s193
        %p195 = scmp.lt.s32.totalorder %s194, 3
        %s196 = scalar_select %p195, %s194, 3
        %s197 = smul.u32 8, %s196
      $region28: #{dconv_forward.1} parent=23 // pred_fallthru
        _
      // Predicated region
      $region29: #{dconv_forward.1} parent=23 // pred_check
        %p198 = pneg %p76
      $region30: #{dconv_forward.1} parent=23 // pred_check_branch
        %200 = sbr.rel (%p198) target = $region32
      $region31: #{dconv_forward.1} parent=23 // pred_region
        %s201 = sadd.s32 %s18, 1
        %s202 = smul.u32 %s201, 3
        %p203 = scmp.lt.s32.totalorder %s17, 1
        %s204 = scalar_select %p203, %s17, 1
        %p205 = scmp.lt.s32.totalorder %s202, 3
        %s206 = scalar_select %p205, %s202, 3
        %s207 = smul.addr %s204, 4
        %s208 = sadd.s32 %s206, %s207
        %s209 = smul.addr %s208, 8
        %s210 = scalar_lea.vmem %s1, %s209
        %s211 = sadd.s32 %s18, 1
        %s212 = smul.u32 %s211, 3
      $region32: #{dconv_forward.1} parent=23 // pred_fallthru
        _
    $region24: #{dconv_forward.1} parent=5 // pred_fallthru
      _
    %p213 = scmp.le.s32.totalorder 1, %s10
    %p214 = scmp.lt.s32.totalorder %s10, 3
    %p215 = pnand %p213, %p214
    %p216 = pneg %p215
    // Predicated region
    $region33: #{dconv_forward.1} parent=5 // pred_check
      _
    $region34: #{dconv_forward.1} parent=5 // pred_check_branch
      %218 = sbr.rel (%p215) target = $region36
    $region35: #{dconv_forward.1} parent=5 // pred_region
      %s219 = ssub.s32 %s10, 1
      %s220 = smul.u32 3, %s20
      %s221 = ssub.s32 4, %s220
      %p222 = scmp.lt.s32.totalorder %s221, 3
      %s223 = scalar_select %p222, %s221, 3
      %s224 = smul.u32 8, %s223
      %p225 = scmp.lt.s32.totalorder %s19, 1
      %s226 = scalar_select %p225, %s19, 1
      %p227 = scmp.lt.s32.totalorder %s220, 3
      %s228 = scalar_select %p227, %s220, 3
      %s229 = smul.addr %s226, 4
      %s230 = sadd.s32 %s228, %s229
      %s231 = smul.addr %s230, 8
      %s232 = scalar_lea.vmem %s0, %s231
      %p233 = pneg %p50
      %p234 = pneg %p47
      %s235 = sadd.s32 %s20, 1
      %s236 = smul.u32 %s235, 3
      %p237 = scmp.lt.s32.totalorder %s19, 1
      %s238 = scalar_select %p237, %s19, 1
      %p239 = scmp.lt.s32.totalorder %s236, 3
      %s240 = scalar_select %p239, %s236, 3
      %s241 = smul.addr %s238, 4
      %s242 = sadd.s32 %s240, %s241
      %s243 = smul.addr %s242, 8
      %s244 = scalar_lea.vmem %s1, %s243
      %p245 = pneg %p82
      %p246 = pneg %p79
      %p247 = pneg %p103
      %p248 = pneg %p100
      %p249 = pneg %p124
      %p250 = pneg %p121
      %p251 = pneg %p152
      %p252 = pneg %p149
      %s253 = smul.u32 3, %s20
      %p254 = scmp.lt.s32.totalorder %s19, 1
      %s255 = scalar_select %p254, %s19, 1
      %p256 = scmp.lt.s32.totalorder %s253, 2
      %s257 = scalar_select %p256, %s253, 2
      %s258 = smul.addr %s255, 3
      %s259 = sadd.s32 %s257, %s258
      %s260 = smul.addr %s259, 4
      %s261 = scalar_lea.vmem %s4, %s260
      %s262 = smul.u32 3, %s20
      %s263 = ssub.s32 4, %s262
      %p264 = scmp.lt.s32.totalorder %s263, 3
      %s265 = scalar_select %p264, %s263, 3
      %s266 = smul.u32 8, %s265
      %p267 = scmp.lt.s32.totalorder %s19, 1
      %s268 = scalar_select %p267, %s19, 1
      %p269 = scmp.lt.s32.totalorder %s262, 3
      %s270 = scalar_select %p269, %s262, 3
      %s271 = smul.addr %s268, 4
      %s272 = sadd.s32 %s270, %s271
      %s273 = smul.addr %s272, 8
      %s274 = scalar_lea.vmem %s0, %s273
      %s275 = smul.u32 3, %s20
      %s276 = ssub.s32 4, %s275
      %p277 = scmp.lt.s32.totalorder %s276, 3
      %s278 = scalar_select %p277, %s276, 3
      %s279 = smul.u32 8, %s278
      %s280 = sadd.s32 %s20, 1
      %s281 = smul.u32 %s280, 3
      %p282 = scmp.lt.s32.totalorder %s19, 1
      %s283 = scalar_select %p282, %s19, 1
      %p284 = scmp.lt.s32.totalorder %s281, 3
      %s285 = scalar_select %p284, %s281, 3
      %s286 = smul.addr %s283, 4
      %s287 = sadd.s32 %s285, %s286
      %s288 = smul.addr %s287, 8
      %s289 = scalar_lea.vmem %s1, %s288
      %s290 = sadd.s32 %s20, 1
      %s291 = smul.u32 %s290, 3
      %s292 = smul.u32 3, %s20
      %p293 = scmp.lt.s32.totalorder %s19, 1
      %s294 = scalar_select %p293, %s19, 1
      %p295 = scmp.lt.s32.totalorder %s292, 2
      %s296 = scalar_select %p295, %s292, 2
      %s297 = smul.addr %s294, 3
      %s298 = sadd.s32 %s296, %s297
      %s299 = smul.addr %s298, 4
      %s300 = scalar_lea.vmem %s4, %s299
      %s301 = smul.u32 3, %s20
      %v302 = vld [vmem:[%s274] sm:$0xff]
      %v303 = vld [vmem:[%s274 + $0x8] sm:$0xff]
      %v304 = vld [vmem:[%s274 + $0x10] sm:$0xff]
      %305 = vst [vmem:[#allocation2] sm:$0xff] %v302
      %306 = vst [vmem:[#allocation2 + $0x8] sm:$0xff] %v303
      %307 = vst [vmem:[#allocation2 + $0x10] sm:$0xff] %v304
      %v308 = vld [vmem:[%s289] sm:$0xff]
      %309 = vst [vmem:[#allocation2 + $0x18] sm:$0xff] %v308
      %v310 = vld [vmem:[%s2] sm:$0xff]
      %v311 = vld [vmem:[#allocation2] sm:$0xff]
      %v312 = vld [vmem:[#allocation2 + $0x8] sm:$0xff]
      %v313 = vld [vmem:[#allocation2 + $0x10] sm:$0xff]
      %v314 = vld [vmem:[#allocation2] sm:$0xff]
      %v315 = vld [vmem:[#allocation2 + $0x8] sm:$0xff]
      %v316 = vld [vmem:[#allocation2 + $0x10] sm:$0xff]
      %v317 = vld [vmem:[#allocation2 + $0x18] sm:$0xff]
      %319 = vrot.lane.b32.xlu0 %v310, 120
      %v320 = vpop.permute.xlu0 %319
      %325 = vrot.lane.b32.xlu0 %v314, 127
      %v326 = vpop.permute.xlu0 %325
      %327 = vrot.lane.b32.xlu0 %v315, 127
      %v328 = vpop.permute.xlu0 %327
      %329 = vrot.lane.b32.xlu0 %v316, 127
      %v330 = vpop.permute.xlu0 %329
      %331 = vrot.lane.b32.xlu0 %v317, 127
      %v332 = vpop.permute.xlu0 %331
      %vm333 = vcmask 1039360
      %v334 = vsel %vm333, %v326, %v328
      %v335 = vsel %vm333, %v328, %v330
      %v336 = vsel %vm333, %v330, %v332
      %vm340 = vcmask 64512
      %v341 = vsel %vm340, %v320, 0
      %343 = vmatpush.msra.mxu0 0.0
      %344 = vmatpush.msra.mxu0 0.0
      %345 = vmatpush.msra.mxu0 0.0
      %346 = vmatpush.msra.mxu0 0.0
      %347 = vmatpush.msra.mxu0 0.0
      %348 = vmatpush.msra.mxu0 0.0
      %349 = vmatpush.msra.mxu0 0.0
      %350 = vmatpush.msra.mxu0 0.0
      %351 = vmatpush.msra.mxu0 0.0
      %352 = vmatpush.msra.mxu0 0.0
      %353 = vmatpush.msra.mxu0 0.0
      %354 = vmatpush.msra.mxu0 0.0
      %355 = vmatpush.msra.mxu0 0.0
      %356 = vmatpush.msra.mxu0 0.0
      %357 = vmatpush.msra.mxu0 0.0
      %358 = vmatpush.msra.mxu0 %v334
      %359 = vmatmul.f32.gmra.mxu0 %v341
      %v360 = vpop.f32.mrf.mxu0
      %v361 = vadd.f32 0.0, %v360
      %362 = vdwg.mxu0
      %363 = vmatpush.msra.mxu0 0.0
      %364 = vmatpush.msra.mxu0 0.0
      %365 = vmatpush.msra.mxu0 0.0
      %366 = vmatpush.msra.mxu0 0.0
      %367 = vmatpush.msra.mxu0 0.0
      %368 = vmatpush.msra.mxu0 0.0
      %369 = vmatpush.msra.mxu0 0.0
      %370 = vmatpush.msra.mxu0 0.0
      %371 = vmatpush.msra.mxu0 0.0
      %372 = vmatpush.msra.mxu0 0.0
      %373 = vmatpush.msra.mxu0 0.0
      %374 = vmatpush.msra.mxu0 0.0
      %375 = vmatpush.msra.mxu0 0.0
      %376 = vmatpush.msra.mxu0 0.0
      %377 = vmatpush.msra.mxu0 0.0
      %378 = vmatpush.msra.mxu0 %v335
      %379 = vmatmul.f32.gmra.mxu0 %v341
      %v380 = vpop.f32.mrf.mxu0
      %v381 = vadd.f32 0.0, %v380
      %382 = vdwg.mxu0
      %383 = vmatpush.msra.mxu0 0.0
      %384 = vmatpush.msra.mxu0 0.0
      %385 = vmatpush.msra.mxu0 0.0
      %386 = vmatpush.msra.mxu0 0.0
      %387 = vmatpush.msra.mxu0 0.0
      %388 = vmatpush.msra.mxu0 0.0
      %389 = vmatpush.msra.mxu0 0.0
      %390 = vmatpush.msra.mxu0 0.0
      %391 = vmatpush.msra.mxu0 0.0
      %392 = vmatpush.msra.mxu0 0.0
      %393 = vmatpush.msra.mxu0 0.0
      %394 = vmatpush.msra.mxu0 0.0
      %395 = vmatpush.msra.mxu0 0.0
      %396 = vmatpush.msra.mxu0 0.0
      %397 = vmatpush.msra.mxu0 0.0
      %398 = vmatpush.msra.mxu0 %v336
      %399 = vmatmul.f32.gmra.mxu0 %v341
      %v400 = vpop.f32.mrf.mxu0
      %v401 = vadd.f32 0.0, %v400
      %402 = vdwg.mxu0
      %v403 = vsel %vm340, %v310, 0
      %405 = vmatpush.msra.mxu0 0.0
      %406 = vmatpush.msra.mxu0 0.0
      %407 = vmatpush.msra.mxu0 0.0
      %408 = vmatpush.msra.mxu0 0.0
      %409 = vmatpush.msra.mxu0 0.0
      %410 = vmatpush.msra.mxu0 0.0
      %411 = vmatpush.msra.mxu0 0.0
      %412 = vmatpush.msra.mxu0 0.0
      %413 = vmatpush.msra.mxu0 0.0
      %414 = vmatpush.msra.mxu0 0.0
      %415 = vmatpush.msra.mxu0 0.0
      %416 = vmatpush.msra.mxu0 0.0
      %417 = vmatpush.msra.mxu0 0.0
      %418 = vmatpush.msra.mxu0 0.0
      %419 = vmatpush.msra.mxu0 0.0
      %420 = vmatpush.msra.mxu0 %v311
      %421 = vmatmul.f32.gmra.mxu0 %v403
      %v422 = vpop.f32.mrf.mxu0
      %v423 = vadd.f32 %v361, %v422
      %424 = vdwg.mxu0
      %425 = vmatpush.msra.mxu0 0.0
      %426 = vmatpush.msra.mxu0 0.0
      %427 = vmatpush.msra.mxu0 0.0
      %428 = vmatpush.msra.mxu0 0.0
      %429 = vmatpush.msra.mxu0 0.0
      %430 = vmatpush.msra.mxu0 0.0
      %431 = vmatpush.msra.mxu0 0.0
      %432 = vmatpush.msra.mxu0 0.0
      %433 = vmatpush.msra.mxu0 0.0
      %434 = vmatpush.msra.mxu0 0.0
      %435 = vmatpush.msra.mxu0 0.0
      %436 = vmatpush.msra.mxu0 0.0
      %437 = vmatpush.msra.mxu0 0.0
      %438 = vmatpush.msra.mxu0 0.0
      %439 = vmatpush.msra.mxu0 0.0
      %440 = vmatpush.msra.mxu0 %v312
      %441 = vmatmul.f32.gmra.mxu0 %v403
      %v442 = vpop.f32.mrf.mxu0
      %v443 = vadd.f32 %v381, %v442
      %444 = vdwg.mxu0
      %445 = vmatpush.msra.mxu0 0.0
      %446 = vmatpush.msra.mxu0 0.0
      %447 = vmatpush.msra.mxu0 0.0
      %448 = vmatpush.msra.mxu0 0.0
      %449 = vmatpush.msra.mxu0 0.0
      %450 = vmatpush.msra.mxu0 0.0
      %451 = vmatpush.msra.mxu0 0.0
      %452 = vmatpush.msra.mxu0 0.0
      %453 = vmatpush.msra.mxu0 0.0
      %454 = vmatpush.msra.mxu0 0.0
      %455 = vmatpush.msra.mxu0 0.0
      %456 = vmatpush.msra.mxu0 0.0
      %457 = vmatpush.msra.mxu0 0.0
      %458 = vmatpush.msra.mxu0 0.0
      %459 = vmatpush.msra.mxu0 0.0
      %460 = vmatpush.msra.mxu0 %v313
      %461 = vmatmul.f32.gmra.mxu0 %v403
      %v462 = vpop.f32.mrf.mxu0
      %v463 = vadd.f32 %v401, %v462
      %464 = vdwg.mxu0
      %465 = vrot.lane.b32.xlu0 %v310, 112
      %v466 = vpop.permute.xlu0 %465
      %467 = vrot.lane.b32.xlu0 %v314, 126
      %v468 = vpop.permute.xlu0 %467
      %469 = vrot.lane.b32.xlu0 %v315, 126
      %v470 = vpop.permute.xlu0 %469
      %471 = vrot.lane.b32.xlu0 %v316, 126
      %v472 = vpop.permute.xlu0 %471
      %473 = vrot.lane.b32.xlu0 %v317, 126
      %v474 = vpop.permute.xlu0 %473
      %vm475 = vcmask 1031168
      %v476 = vsel %vm475, %v468, %v470
      %v477 = vsel %vm475, %v470, %v472
      %v478 = vsel %vm475, %v472, %v474
      %v482 = vsel %vm340, %v466, 0
      %484 = vmatpush.msra.mxu0 0.0
      %485 = vmatpush.msra.mxu0 0.0
      %486 = vmatpush.msra.mxu0 0.0
      %487 = vmatpush.msra.mxu0 0.0
      %488 = vmatpush.msra.mxu0 0.0
      %489 = vmatpush.msra.mxu0 0.0
      %490 = vmatpush.msra.mxu0 0.0
      %491 = vmatpush.msra.mxu0 0.0
      %492 = vmatpush.msra.mxu0 0.0
      %493 = vmatpush.msra.mxu0 0.0
      %494 = vmatpush.msra.mxu0 0.0
      %495 = vmatpush.msra.mxu0 0.0
      %496 = vmatpush.msra.mxu0 0.0
      %497 = vmatpush.msra.mxu0 0.0
      %498 = vmatpush.msra.mxu0 0.0
      %499 = vmatpush.msra.mxu0 %v476
      %500 = vmatmul.f32.gmra.mxu0 %v482
      %v501 = vpop.f32.mrf.mxu0
      %v502 = vadd.f32 0.0, %v501
      %503 = vdwg.mxu0
      %504 = vmatpush.msra.mxu0 0.0
      %505 = vmatpush.msra.mxu0 0.0
      %506 = vmatpush.msra.mxu0 0.0
      %507 = vmatpush.msra.mxu0 0.0
      %508 = vmatpush.msra.mxu0 0.0
      %509 = vmatpush.msra.mxu0 0.0
      %510 = vmatpush.msra.mxu0 0.0
      %511 = vmatpush.msra.mxu0 0.0
      %512 = vmatpush.msra.mxu0 0.0
      %513 = vmatpush.msra.mxu0 0.0
      %514 = vmatpush.msra.mxu0 0.0
      %515 = vmatpush.msra.mxu0 0.0
      %516 = vmatpush.msra.mxu0 0.0
      %517 = vmatpush.msra.mxu0 0.0
      %518 = vmatpush.msra.mxu0 0.0
      %519 = vmatpush.msra.mxu0 %v477
      %520 = vmatmul.f32.gmra.mxu0 %v482
      %v521 = vpop.f32.mrf.mxu0
      %v522 = vadd.f32 0.0, %v521
      %523 = vdwg.mxu0
      %524 = vmatpush.msra.mxu0 0.0
      %525 = vmatpush.msra.mxu0 0.0
      %526 = vmatpush.msra.mxu0 0.0
      %527 = vmatpush.msra.mxu0 0.0
      %528 = vmatpush.msra.mxu0 0.0
      %529 = vmatpush.msra.mxu0 0.0
      %530 = vmatpush.msra.mxu0 0.0
      %531 = vmatpush.msra.mxu0 0.0
      %532 = vmatpush.msra.mxu0 0.0
      %533 = vmatpush.msra.mxu0 0.0
      %534 = vmatpush.msra.mxu0 0.0
      %535 = vmatpush.msra.mxu0 0.0
      %536 = vmatpush.msra.mxu0 0.0
      %537 = vmatpush.msra.mxu0 0.0
      %538 = vmatpush.msra.mxu0 0.0
      %539 = vmatpush.msra.mxu0 %v478
      %540 = vmatmul.f32.gmra.mxu0 %v482
      %v541 = vpop.f32.mrf.mxu0
      %v542 = vadd.f32 0.0, %v541
      %543 = vdwg.mxu0
      %v544 = vadd.f32 %v423, %v502
      %v545 = vadd.f32 %v443, %v522
      %v546 = vadd.f32 %v463, %v542
      %547 = vrot.lane.b32.xlu0 %v310, 104
      %v548 = vpop.permute.xlu0 %547
      %549 = vrot.lane.b32.xlu0 %v314, 110
      %v550 = vpop.permute.xlu0 %549
      %551 = vrot.lane.b32.xlu0 %v315, 110
      %v552 = vpop.permute.xlu0 %551
      %553 = vrot.lane.b32.xlu0 %v316, 110
      %v554 = vpop.permute.xlu0 %553
      %555 = vrot.lane.b32.xlu0 %v317, 110
      %v556 = vpop.permute.xlu0 %555
      %vm557 = vcmask 900096
      %v558 = vsel %vm557, %v550, %v552
      %v559 = vsel %vm557, %v552, %v554
      %v560 = vsel %vm557, %v554, %v556
      %v564 = vsel %vm340, %v548, 0
      %566 = vmatpush.msra.mxu0 0.0
      %567 = vmatpush.msra.mxu0 0.0
      %568 = vmatpush.msra.mxu0 0.0
      %569 = vmatpush.msra.mxu0 0.0
      %570 = vmatpush.msra.mxu0 0.0
      %571 = vmatpush.msra.mxu0 0.0
      %572 = vmatpush.msra.mxu0 0.0
      %573 = vmatpush.msra.mxu0 0.0
      %574 = vmatpush.msra.mxu0 0.0
      %575 = vmatpush.msra.mxu0 0.0
      %576 = vmatpush.msra.mxu0 0.0
      %577 = vmatpush.msra.mxu0 0.0
      %578 = vmatpush.msra.mxu0 0.0
      %579 = vmatpush.msra.mxu0 0.0
      %580 = vmatpush.msra.mxu0 0.0
      %581 = vmatpush.msra.mxu0 %v558
      %582 = vmatmul.f32.gmra.mxu0 %v564
      %v583 = vpop.f32.mrf.mxu0
      %v584 = vadd.f32 0.0, %v583
      %585 = vdwg.mxu0
      %586 = vmatpush.msra.mxu0 0.0
      %587 = vmatpush.msra.mxu0 0.0
      %588 = vmatpush.msra.mxu0 0.0
      %589 = vmatpush.msra.mxu0 0.0
      %590 = vmatpush.msra.mxu0 0.0
      %591 = vmatpush.msra.mxu0 0.0
      %592 = vmatpush.msra.mxu0 0.0
      %593 = vmatpush.msra.mxu0 0.0
      %594 = vmatpush.msra.mxu0 0.0
      %595 = vmatpush.msra.mxu0 0.0
      %596 = vmatpush.msra.mxu0 0.0
      %597 = vmatpush.msra.mxu0 0.0
      %598 = vmatpush.msra.mxu0 0.0
      %599 = vmatpush.msra.mxu0 0.0
      %600 = vmatpush.msra.mxu0 0.0
      %601 = vmatpush.msra.mxu0 %v559
      %602 = vmatmul.f32.gmra.mxu0 %v564
      %v603 = vpop.f32.mrf.mxu0
      %v604 = vadd.f32 0.0, %v603
      %605 = vdwg.mxu0
      %606 = vmatpush.msra.mxu0 0.0
      %607 = vmatpush.msra.mxu0 0.0
      %608 = vmatpush.msra.mxu0 0.0
      %609 = vmatpush.msra.mxu0 0.0
      %610 = vmatpush.msra.mxu0 0.0
      %611 = vmatpush.msra.mxu0 0.0
      %612 = vmatpush.msra.mxu0 0.0
      %613 = vmatpush.msra.mxu0 0.0
      %614 = vmatpush.msra.mxu0 0.0
      %615 = vmatpush.msra.mxu0 0.0
      %616 = vmatpush.msra.mxu0 0.0
      %617 = vmatpush.msra.mxu0 0.0
      %618 = vmatpush.msra.mxu0 0.0
      %619 = vmatpush.msra.mxu0 0.0
      %620 = vmatpush.msra.mxu0 0.0
      %621 = vmatpush.msra.mxu0 %v560
      %622 = vmatmul.f32.gmra.mxu0 %v564
      %v623 = vpop.f32.mrf.mxu0
      %v624 = vadd.f32 0.0, %v623
      %625 = vdwg.mxu0
      %v626 = vadd.f32 %v544, %v584
      %v627 = vadd.f32 %v545, %v604
      %v628 = vadd.f32 %v546, %v624
      %629 = vrot.lane.b32.xlu0 %v310, 96
      %v630 = vpop.permute.xlu0 %629
      %631 = vrot.lane.b32.xlu0 %v314, 109
      %v632 = vpop.permute.xlu0 %631
      %633 = vrot.lane.b32.xlu0 %v315, 109
      %v634 = vpop.permute.xlu0 %633
      %635 = vrot.lane.b32.xlu0 %v316, 109
      %v636 = vpop.permute.xlu0 %635
      %637 = vrot.lane.b32.xlu0 %v317, 109
      %v638 = vpop.permute.xlu0 %637
      %vm639 = vcmask 891904
      %v640 = vsel %vm639, %v632, %v634
      %v641 = vsel %vm639, %v634, %v636
      %v642 = vsel %vm639, %v636, %v638
      %v646 = vsel %vm340, %v630, 0
      %648 = vmatpush.msra.mxu0 0.0
      %649 = vmatpush.msra.mxu0 0.0
      %650 = vmatpush.msra.mxu0 0.0
      %651 = vmatpush.msra.mxu0 0.0
      %652 = vmatpush.msra.mxu0 0.0
      %653 = vmatpush.msra.mxu0 0.0
      %654 = vmatpush.msra.mxu0 0.0
      %655 = vmatpush.msra.mxu0 0.0
      %656 = vmatpush.msra.mxu0 0.0
      %657 = vmatpush.msra.mxu0 0.0
      %658 = vmatpush.msra.mxu0 0.0
      %659 = vmatpush.msra.mxu0 0.0
      %660 = vmatpush.msra.mxu0 0.0
      %661 = vmatpush.msra.mxu0 0.0
      %662 = vmatpush.msra.mxu0 0.0
      %663 = vmatpush.msra.mxu0 %v640
      %664 = vmatmul.f32.gmra.mxu0 %v646
      %v665 = vpop.f32.mrf.mxu0
      %v666 = vadd.f32 0.0, %v665
      %667 = vdwg.mxu0
      %668 = vmatpush.msra.mxu0 0.0
      %669 = vmatpush.msra.mxu0 0.0
      %670 = vmatpush.msra.mxu0 0.0
      %671 = vmatpush.msra.mxu0 0.0
      %672 = vmatpush.msra.mxu0 0.0
      %673 = vmatpush.msra.mxu0 0.0
      %674 = vmatpush.msra.mxu0 0.0
      %675 = vmatpush.msra.mxu0 0.0
      %676 = vmatpush.msra.mxu0 0.0
      %677 = vmatpush.msra.mxu0 0.0
      %678 = vmatpush.msra.mxu0 0.0
      %679 = vmatpush.msra.mxu0 0.0
      %680 = vmatpush.msra.mxu0 0.0
      %681 = vmatpush.msra.mxu0 0.0
      %682 = vmatpush.msra.mxu0 0.0
      %683 = vmatpush.msra.mxu0 %v641
      %684 = vmatmul.f32.gmra.mxu0 %v646
      %v685 = vpop.f32.mrf.mxu0
      %v686 = vadd.f32 0.0, %v685
      %687 = vdwg.mxu0
      %688 = vmatpush.msra.mxu0 0.0
      %689 = vmatpush.msra.mxu0 0.0
      %690 = vmatpush.msra.mxu0 0.0
      %691 = vmatpush.msra.mxu0 0.0
      %692 = vmatpush.msra.mxu0 0.0
      %693 = vmatpush.msra.mxu0 0.0
      %694 = vmatpush.msra.mxu0 0.0
      %695 = vmatpush.msra.mxu0 0.0
      %696 = vmatpush.msra.mxu0 0.0
      %697 = vmatpush.msra.mxu0 0.0
      %698 = vmatpush.msra.mxu0 0.0
      %699 = vmatpush.msra.mxu0 0.0
      %700 = vmatpush.msra.mxu0 0.0
      %701 = vmatpush.msra.mxu0 0.0
      %702 = vmatpush.msra.mxu0 0.0
      %703 = vmatpush.msra.mxu0 %v642
      %704 = vmatmul.f32.gmra.mxu0 %v646
      %v705 = vpop.f32.mrf.mxu0
      %v706 = vadd.f32 0.0, %v705
      %707 = vdwg.mxu0
      %v708 = vadd.f32 %v626, %v666
      %v709 = vadd.f32 %v627, %v686
      %v710 = vadd.f32 %v628, %v706
      %711 = vrot.lane.b32.xlu0 %v310, 88
      %v712 = vpop.permute.xlu0 %711
      %713 = vrot.lane.b32.xlu0 %v314, 108
      %v714 = vpop.permute.xlu0 %713
      %715 = vrot.lane.b32.xlu0 %v315, 108
      %v716 = vpop.permute.xlu0 %715
      %717 = vrot.lane.b32.xlu0 %v316, 108
      %v718 = vpop.permute.xlu0 %717
      %719 = vrot.lane.b32.xlu0 %v317, 108
      %v720 = vpop.permute.xlu0 %719
      %vm721 = vcmask 883712
      %v722 = vsel %vm721, %v714, %v716
      %v723 = vsel %vm721, %v716, %v718
      %v724 = vsel %vm721, %v718, %v720
      %v728 = vsel %vm340, %v712, 0
      %730 = vmatpush.msra.mxu0 0.0
      %731 = vmatpush.msra.mxu0 0.0
      %732 = vmatpush.msra.mxu0 0.0
      %733 = vmatpush.msra.mxu0 0.0
      %734 = vmatpush.msra.mxu0 0.0
      %735 = vmatpush.msra.mxu0 0.0
      %736 = vmatpush.msra.mxu0 0.0
      %737 = vmatpush.msra.mxu0 0.0
      %738 = vmatpush.msra.mxu0 0.0
      %739 = vmatpush.msra.mxu0 0.0
      %740 = vmatpush.msra.mxu0 0.0
      %741 = vmatpush.msra.mxu0 0.0
      %742 = vmatpush.msra.mxu0 0.0
      %743 = vmatpush.msra.mxu0 0.0
      %744 = vmatpush.msra.mxu0 0.0
      %745 = vmatpush.msra.mxu0 %v722
      %746 = vmatmul.f32.gmra.mxu0 %v728
      %v747 = vpop.f32.mrf.mxu0
      %v748 = vadd.f32 0.0, %v747
      %749 = vdwg.mxu0
      %750 = vmatpush.msra.mxu0 0.0
      %751 = vmatpush.msra.mxu0 0.0
      %752 = vmatpush.msra.mxu0 0.0
      %753 = vmatpush.msra.mxu0 0.0
      %754 = vmatpush.msra.mxu0 0.0
      %755 = vmatpush.msra.mxu0 0.0
      %756 = vmatpush.msra.mxu0 0.0
      %757 = vmatpush.msra.mxu0 0.0
      %758 = vmatpush.msra.mxu0 0.0
      %759 = vmatpush.msra.mxu0 0.0
      %760 = vmatpush.msra.mxu0 0.0
      %761 = vmatpush.msra.mxu0 0.0
      %762 = vmatpush.msra.mxu0 0.0
      %763 = vmatpush.msra.mxu0 0.0
      %764 = vmatpush.msra.mxu0 0.0
      %765 = vmatpush.msra.mxu0 %v723
      %766 = vmatmul.f32.gmra.mxu0 %v728
      %v767 = vpop.f32.mrf.mxu0
      %v768 = vadd.f32 0.0, %v767
      %769 = vdwg.mxu0
      %770 = vmatpush.msra.mxu0 0.0
      %771 = vmatpush.msra.mxu0 0.0
      %772 = vmatpush.msra.mxu0 0.0
      %773 = vmatpush.msra.mxu0 0.0
      %774 = vmatpush.msra.mxu0 0.0
      %775 = vmatpush.msra.mxu0 0.0
      %776 = vmatpush.msra.mxu0 0.0
      %777 = vmatpush.msra.mxu0 0.0
      %778 = vmatpush.msra.mxu0 0.0
      %779 = vmatpush.msra.mxu0 0.0
      %780 = vmatpush.msra.mxu0 0.0
      %781 = vmatpush.msra.mxu0 0.0
      %782 = vmatpush.msra.mxu0 0.0
      %783 = vmatpush.msra.mxu0 0.0
      %784 = vmatpush.msra.mxu0 0.0
      %785 = vmatpush.msra.mxu0 %v724
      %786 = vmatmul.f32.gmra.mxu0 %v728
      %v787 = vpop.f32.mrf.mxu0
      %v788 = vadd.f32 0.0, %v787
      %789 = vdwg.mxu0
      %v790 = vadd.f32 %v708, %v748
      %v791 = vadd.f32 %v709, %v768
      %v792 = vadd.f32 %v710, %v788
      %793 = vrot.lane.b32.xlu0 %v310, 80
      %v794 = vpop.permute.xlu0 %793
      %795 = vrot.lane.b32.xlu0 %v314, 92
      %v796 = vpop.permute.xlu0 %795
      %797 = vrot.lane.b32.xlu0 %v315, 92
      %v798 = vpop.permute.xlu0 %797
      %799 = vrot.lane.b32.xlu0 %v316, 92
      %v800 = vpop.permute.xlu0 %799
      %801 = vrot.lane.b32.xlu0 %v317, 92
      %v802 = vpop.permute.xlu0 %801
      %vm803 = vcmask 752640
      %v804 = vsel %vm803, %v796, %v798
      %v805 = vsel %vm803, %v798, %v800
      %v806 = vsel %vm803, %v800, %v802
      %v810 = vsel %vm340, %v794, 0
      %812 = vmatpush.msra.mxu0 0.0
      %813 = vmatpush.msra.mxu0 0.0
      %814 = vmatpush.msra.mxu0 0.0
      %815 = vmatpush.msra.mxu0 0.0
      %816 = vmatpush.msra.mxu0 0.0
      %817 = vmatpush.msra.mxu0 0.0
      %818 = vmatpush.msra.mxu0 0.0
      %819 = vmatpush.msra.mxu0 0.0
      %820 = vmatpush.msra.mxu0 0.0
      %821 = vmatpush.msra.mxu0 0.0
      %822 = vmatpush.msra.mxu0 0.0
      %823 = vmatpush.msra.mxu0 0.0
      %824 = vmatpush.msra.mxu0 0.0
      %825 = vmatpush.msra.mxu0 0.0
      %826 = vmatpush.msra.mxu0 0.0
      %827 = vmatpush.msra.mxu0 %v804
      %828 = vmatmul.f32.gmra.mxu0 %v810
      %v829 = vpop.f32.mrf.mxu0
      %v830 = vadd.f32 0.0, %v829
      %831 = vdwg.mxu0
      %832 = vmatpush.msra.mxu0 0.0
      %833 = vmatpush.msra.mxu0 0.0
      %834 = vmatpush.msra.mxu0 0.0
      %835 = vmatpush.msra.mxu0 0.0
      %836 = vmatpush.msra.mxu0 0.0
      %837 = vmatpush.msra.mxu0 0.0
      %838 = vmatpush.msra.mxu0 0.0
      %839 = vmatpush.msra.mxu0 0.0
      %840 = vmatpush.msra.mxu0 0.0
      %841 = vmatpush.msra.mxu0 0.0
      %842 = vmatpush.msra.mxu0 0.0
      %843 = vmatpush.msra.mxu0 0.0
      %844 = vmatpush.msra.mxu0 0.0
      %845 = vmatpush.msra.mxu0 0.0
      %846 = vmatpush.msra.mxu0 0.0
      %847 = vmatpush.msra.mxu0 %v805
      %848 = vmatmul.f32.gmra.mxu0 %v810
      %v849 = vpop.f32.mrf.mxu0
      %v850 = vadd.f32 0.0, %v849
      %851 = vdwg.mxu0
      %852 = vmatpush.msra.mxu0 0.0
      %853 = vmatpush.msra.mxu0 0.0
      %854 = vmatpush.msra.mxu0 0.0
      %855 = vmatpush.msra.mxu0 0.0
      %856 = vmatpush.msra.mxu0 0.0
      %857 = vmatpush.msra.mxu0 0.0
      %858 = vmatpush.msra.mxu0 0.0
      %859 = vmatpush.msra.mxu0 0.0
      %860 = vmatpush.msra.mxu0 0.0
      %861 = vmatpush.msra.mxu0 0.0
      %862 = vmatpush.msra.mxu0 0.0
      %863 = vmatpush.msra.mxu0 0.0
      %864 = vmatpush.msra.mxu0 0.0
      %865 = vmatpush.msra.mxu0 0.0
      %866 = vmatpush.msra.mxu0 0.0
      %867 = vmatpush.msra.mxu0 %v806
      %868 = vmatmul.f32.gmra.mxu0 %v810
      %v869 = vpop.f32.mrf.mxu0
      %v870 = vadd.f32 0.0, %v869
      %871 = vdwg.mxu0
      %v872 = vadd.f32 %v790, %v830
      %v873 = vadd.f32 %v791, %v850
      %v874 = vadd.f32 %v792, %v870
      %875 = vrot.lane.b32.xlu0 %v310, 72
      %v876 = vpop.permute.xlu0 %875
      %877 = vrot.lane.b32.xlu0 %v314, 91
      %v878 = vpop.permute.xlu0 %877
      %879 = vrot.lane.b32.xlu0 %v315, 91
      %v880 = vpop.permute.xlu0 %879
      %881 = vrot.lane.b32.xlu0 %v316, 91
      %v882 = vpop.permute.xlu0 %881
      %883 = vrot.lane.b32.xlu0 %v317, 91
      %v884 = vpop.permute.xlu0 %883
      %vm885 = vcmask 744448
      %v886 = vsel %vm885, %v878, %v880
      %v887 = vsel %vm885, %v880, %v882
      %v888 = vsel %vm885, %v882, %v884
      %v892 = vsel %vm340, %v876, 0
      %894 = vmatpush.msra.mxu0 0.0
      %895 = vmatpush.msra.mxu0 0.0
      %896 = vmatpush.msra.mxu0 0.0
      %897 = vmatpush.msra.mxu0 0.0
      %898 = vmatpush.msra.mxu0 0.0
      %899 = vmatpush.msra.mxu0 0.0
      %900 = vmatpush.msra.mxu0 0.0
      %901 = vmatpush.msra.mxu0 0.0
      %902 = vmatpush.msra.mxu0 0.0
      %903 = vmatpush.msra.mxu0 0.0
      %904 = vmatpush.msra.mxu0 0.0
      %905 = vmatpush.msra.mxu0 0.0
      %906 = vmatpush.msra.mxu0 0.0
      %907 = vmatpush.msra.mxu0 0.0
      %908 = vmatpush.msra.mxu0 0.0
      %909 = vmatpush.msra.mxu0 %v886
      %910 = vmatmul.f32.gmra.mxu0 %v892
      %v911 = vpop.f32.mrf.mxu0
      %v912 = vadd.f32 0.0, %v911
      %913 = vdwg.mxu0
      %914 = vmatpush.msra.mxu0 0.0
      %915 = vmatpush.msra.mxu0 0.0
      %916 = vmatpush.msra.mxu0 0.0
      %917 = vmatpush.msra.mxu0 0.0
      %918 = vmatpush.msra.mxu0 0.0
      %919 = vmatpush.msra.mxu0 0.0
      %920 = vmatpush.msra.mxu0 0.0
      %921 = vmatpush.msra.mxu0 0.0
      %922 = vmatpush.msra.mxu0 0.0
      %923 = vmatpush.msra.mxu0 0.0
      %924 = vmatpush.msra.mxu0 0.0
      %925 = vmatpush.msra.mxu0 0.0
      %926 = vmatpush.msra.mxu0 0.0
      %927 = vmatpush.msra.mxu0 0.0
      %928 = vmatpush.msra.mxu0 0.0
      %929 = vmatpush.msra.mxu0 %v887
      %930 = vmatmul.f32.gmra.mxu0 %v892
      %v931 = vpop.f32.mrf.mxu0
      %v932 = vadd.f32 0.0, %v931
      %933 = vdwg.mxu0
      %934 = vmatpush.msra.mxu0 0.0
      %935 = vmatpush.msra.mxu0 0.0
      %936 = vmatpush.msra.mxu0 0.0
      %937 = vmatpush.msra.mxu0 0.0
      %938 = vmatpush.msra.mxu0 0.0
      %939 = vmatpush.msra.mxu0 0.0
      %940 = vmatpush.msra.mxu0 0.0
      %941 = vmatpush.msra.mxu0 0.0
      %942 = vmatpush.msra.mxu0 0.0
      %943 = vmatpush.msra.mxu0 0.0
      %944 = vmatpush.msra.mxu0 0.0
      %945 = vmatpush.msra.mxu0 0.0
      %946 = vmatpush.msra.mxu0 0.0
      %947 = vmatpush.msra.mxu0 0.0
      %948 = vmatpush.msra.mxu0 0.0
      %949 = vmatpush.msra.mxu0 %v888
      %950 = vmatmul.f32.gmra.mxu0 %v892
      %v951 = vpop.f32.mrf.mxu0
      %v952 = vadd.f32 0.0, %v951
      %953 = vdwg.mxu0
      %v954 = vadd.f32 %v872, %v912
      %v955 = vadd.f32 %v873, %v932
      %v956 = vadd.f32 %v874, %v952
      %957 = vrot.lane.b32.xlu0 %v310, 64
      %v958 = vpop.permute.xlu0 %957
      %959 = vrot.lane.b32.xlu0 %v314, 90
      %v960 = vpop.permute.xlu0 %959
      %961 = vrot.lane.b32.xlu0 %v315, 90
      %v962 = vpop.permute.xlu0 %961
      %963 = vrot.lane.b32.xlu0 %v316, 90
      %v964 = vpop.permute.xlu0 %963
      %965 = vrot.lane.b32.xlu0 %v317, 90
      %v966 = vpop.permute.xlu0 %965
      %vm967 = vcmask 736256
      %v968 = vsel %vm967, %v960, %v962
      %v969 = vsel %vm967, %v962, %v964
      %v970 = vsel %vm967, %v964, %v966
      %v974 = vsel %vm340, %v958, 0
      %976 = vmatpush.msra.mxu0 0.0
      %977 = vmatpush.msra.mxu0 0.0
      %978 = vmatpush.msra.mxu0 0.0
      %979 = vmatpush.msra.mxu0 0.0
      %980 = vmatpush.msra.mxu0 0.0
      %981 = vmatpush.msra.mxu0 0.0
      %982 = vmatpush.msra.mxu0 0.0
      %983 = vmatpush.msra.mxu0 0.0
      %984 = vmatpush.msra.mxu0 0.0
      %985 = vmatpush.msra.mxu0 0.0
      %986 = vmatpush.msra.mxu0 0.0
      %987 = vmatpush.msra.mxu0 0.0
      %988 = vmatpush.msra.mxu0 0.0
      %989 = vmatpush.msra.mxu0 0.0
      %990 = vmatpush.msra.mxu0 0.0
      %991 = vmatpush.msra.mxu0 %v968
      %992 = vmatmul.f32.gmra.mxu0 %v974
      %v993 = vpop.f32.mrf.mxu0
      %v994 = vadd.f32 0.0, %v993
      %995 = vdwg.mxu0
      %996 = vmatpush.msra.mxu0 0.0
      %997 = vmatpush.msra.mxu0 0.0
      %998 = vmatpush.msra.mxu0 0.0
      %999 = vmatpush.msra.mxu0 0.0
      %1000 = vmatpush.msra.mxu0 0.0
      %1001 = vmatpush.msra.mxu0 0.0
      %1002 = vmatpush.msra.mxu0 0.0
      %1003 = vmatpush.msra.mxu0 0.0
      %1004 = vmatpush.msra.mxu0 0.0
      %1005 = vmatpush.msra.mxu0 0.0
      %1006 = vmatpush.msra.mxu0 0.0
      %1007 = vmatpush.msra.mxu0 0.0
      %1008 = vmatpush.msra.mxu0 0.0
      %1009 = vmatpush.msra.mxu0 0.0
      %1010 = vmatpush.msra.mxu0 0.0
      %1011 = vmatpush.msra.mxu0 %v969
      %1012 = vmatmul.f32.gmra.mxu0 %v974
      %v1013 = vpop.f32.mrf.mxu0
      %v1014 = vadd.f32 0.0, %v1013
      %1015 = vdwg.mxu0
      %1016 = vmatpush.msra.mxu0 0.0
      %1017 = vmatpush.msra.mxu0 0.0
      %1018 = vmatpush.msra.mxu0 0.0
      %1019 = vmatpush.msra.mxu0 0.0
      %1020 = vmatpush.msra.mxu0 0.0
      %1021 = vmatpush.msra.mxu0 0.0
      %1022 = vmatpush.msra.mxu0 0.0
      %1023 = vmatpush.msra.mxu0 0.0
      %1024 = vmatpush.msra.mxu0 0.0
      %1025 = vmatpush.msra.mxu0 0.0
      %1026 = vmatpush.msra.mxu0 0.0
      %1027 = vmatpush.msra.mxu0 0.0
      %1028 = vmatpush.msra.mxu0 0.0
      %1029 = vmatpush.msra.mxu0 0.0
      %1030 = vmatpush.msra.mxu0 0.0
      %1031 = vmatpush.msra.mxu0 %v970
      %1032 = vmatmul.f32.gmra.mxu0 %v974
      %v1033 = vpop.f32.mrf.mxu0
      %v1034 = vadd.f32 0.0, %v1033
      %1035 = vdwg.mxu0
      %v1036 = vadd.f32 %v954, %v994
      %v1037 = vadd.f32 %v955, %v1014
      %v1038 = vadd.f32 %v956, %v1034
      %v1039 = vld [vmem:[%s3] sm:$0xff]
      %1041 = vset.pattern.permute.xlu0 0
      %1042 = vperm.xlu0 %1041, %v1039
      %v1043 = vpop.permute.xlu0 %1042
      %v1045 = vadd.f32 %v1036, %v1043
      %v1046 = vadd.f32 %v1037, %v1043
      %v1047 = vadd.f32 %v1038, %v1043
      %v1048 = vmax.f32 %v1045, 0.0
      %v1049 = vmax.f32 %v1046, 0.0
      %v1050 = vmax.f32 %v1047, 0.0
      %v1053 = vrot.slane %v1049, 4
      %vm1054 = vcmask 1043456
      %v1055 = vsel %vm1054, %v1048, %v1053
      %1057 = vst [vmem:[%s300] sm:$0xff] %v1055
      %1058 = vst [vmem:[%s300 + $0x8] sm:$0xf] %v1050
      %s1059 = smul.u32 3, %s20
      %p1060 = scmp.lt.s32.totalorder %s19, 1
      %s1061 = scalar_select %p1060, %s19, 1
      %p1062 = scmp.lt.s32.totalorder %s1059, 2
      %s1063 = scalar_select %p1062, %s1059, 2
      %s1064 = smul.addr %s1061, 3
      %s1065 = sadd.s32 %s1063, %s1064
      %s1066 = smul.addr %s1065, 4
      %s1067 = scalar_lea.vmem %s4, %s1066
      // Predicated region
      $region37: #{dconv_forward.1} parent=35 // pred_check
        %p1068 = pneg %p149
      $region38: #{dconv_forward.1} parent=35 // pred_check_branch
        %1070 = sbr.rel (%p1068) target = $region40
      $region39: #{dconv_forward.1} parent=35 // pred_region
        %s1071 = smul.u32 3, %s20
      $region40: #{dconv_forward.1} parent=35 // pred_fallthru
        _
    $region36: #{dconv_forward.1} parent=5 // pred_fallthru
      _
    %p1072 = scmp.le.s32.totalorder 2, %s10
    // Predicated region
    $region41: #{dconv_forward.1} parent=5 // pred_check
      %p1073 = pneg %p1072
    $region42: #{dconv_forward.1} parent=5 // pred_check_branch
      %1075 = sbr.rel (%p1073) target = $region44
    $region43: #{dconv_forward.1} parent=5 // pred_region
      %s1076 = ssub.s32 %s10, 2
      // Predicated region
      $region45: #{dconv_forward.1} parent=43 // pred_check
        %p1077 = pneg %p155
      $region46: #{dconv_forward.1} parent=43 // pred_check_branch
        %1079 = sbr.rel (%p1077) target = $region48
      $region47: #{dconv_forward.1} parent=43 // pred_region
        %s1080 = smul.u32 3, %s22
        %p1081 = scmp.lt.s32.totalorder %s21, 1
        %s1082 = scalar_select %p1081, %s21, 1
        %p1083 = scmp.lt.s32.totalorder %s1080, 2
        %s1084 = scalar_select %p1083, %s1080, 2
        %s1085 = smul.addr %s1082, 3
        %s1086 = sadd.s32 %s1084, %s1085
        %s1087 = smul.addr %s1086, 4
        %s1088 = scalar_lea.vmem %s4, %s1087
      $region48: #{dconv_forward.1} parent=43 // pred_fallthru
        _
    $region44: #{dconv_forward.1} parent=5 // pred_fallthru
      _
  $region6: #{dconv_forward.1} parent=0 // loop_footer
    %s14 = sadd.s32 1, %s10
  $region7: #{dconv_forward.1} parent=0 // loop_footer_branch
    %9 = sbr.rel target = $region3
  $region8: #{dconv_forward.1} parent=0 // loop_exit
    _

</llo_original>
